<compile_context>
chip_gen: v5e
topology: v5e:2x2
jax: 0.10.0
libtpu: 0.0.40
codegen_flags: <defaults>
</compile_context>

<pallas_src>
import functools

import jax
import jax.numpy as jnp
from jax.experimental import pallas as pl
from jax.experimental.pallas import tpu as pltpu

BN_EPS = 1e-5


def _round_up(n, m):
    return ((n + m - 1) // m) * m


def _pick_tile(batch, tb_target):
    """Batch tile: multiple of 128, <= tb_target, with small padding waste."""
    b128 = _round_up(batch, 128)
    tb_target = max(128, _round_up(min(int(tb_target), b128), 128))
    n_tiles = -(-b128 // tb_target)
    return _round_up(-(-b128 // n_tiles), 128)


def _stats_kernel(x_ref, w1_ref, b1_ref, w2_ref, sum_ref, sq_ref, *, n_chunks):
    """Accumulate per-feature sum / sum-of-squares of (h2 - c), c = W2 @ relu(b1)."""
    i = pl.program_id(0)

    @pl.when(i == 0)
    def _():
        sum_ref[...] = jnp.zeros_like(sum_ref)
        sq_ref[...] = jnp.zeros_like(sq_ref)

    x = x_ref[...]                                                       # (in, TB)
    b1 = b1_ref[...]                                                     # (hid, 1)
    h1 = jnp.maximum(jnp.dot(w1_ref[...], x, preferred_element_type=jnp.float32)
                     + b1, 0.0)
    # Pivot shift: subtract the x==0 baseline relu(b1).  Padded (all-zero)
    # batch columns then contribute *exactly* zero to both accumulators, so no
    # masking is needed, and the shifted sums are well conditioned.
    h1 = h1 - jnp.maximum(b1, 0.0)                                       # (hid, TB)
    # NOTE: b2 omitted -- exactly cancelled by the BN mean subtraction.
    h2 = jnp.dot(w2_ref[...], h1, preferred_element_type=jnp.float32)    # (mid, TB)

    # Lane-keeping accumulation: cheap VALU adds over 128-lane chunks; the
    # final cross-lane reduce happens once, inside pass 2.
    s = h2[:, 0:128]
    q = s * s
    for k in range(1, n_chunks):
        blk = h2[:, k * 128:(k + 1) * 128]
        s = s + blk
        q = q + blk * blk
    sum_ref[...] += s
    sq_ref[...] += q


def _out_kernel(x_ref, w1_ref, b1_ref, w2_ref, sum_ref, sq_ref, c_ref,
                gamma_ref, beta_ref, w3_ref, b3_ref, out_ref, *, inv_b):
    # Fold training-mode BN into a per-feature affine (22-element math; noise).
    s1 = jnp.sum(sum_ref[...], axis=1, keepdims=True) * inv_b            # E[h2 - c]
    s2 = jnp.sum(sq_ref[...], axis=1, keepdims=True) * inv_b             # E[(h2 - c)^2]
    mean = c_ref[...] + s1
    var = jnp.maximum(s2 - s1 * s1, 0.0)                                 # biased variance
    inv_std = jax.lax.rsqrt(var + BN_EPS)
    scale = gamma_ref[...] * inv_std
    shift = beta_ref[...] - mean * scale

    x = x_ref[...]                                                       # (in, TB)
    h1 = jnp.maximum(jnp.dot(w1_ref[...], x, preferred_element_type=jnp.float32)
                     + b1_ref[...], 0.0)                                 # (hid, TB)
    h2 = jnp.dot(w2_ref[...], h1, preferred_element_type=jnp.float32)    # (mid, TB), b2 cancelled
    h3 = jnp.maximum(h2 * scale + shift, 0.0)                            # fused BN + ReLU
    out_fm = jnp.dot(w3_ref[...], h3, preferred_element_type=jnp.float32) + b3_ref[...]
    # In-kernel transpose -> (TB, out); the HBM output is row-major (B_pad, out)
    # so the per-tile write is one contiguous burst and no XLA transpose is needed.
    out_ref[...] = out_fm.T.astype(out_ref.dtype)


def mmann_forward(x, params, *, tb=8192):
    """MMANN forward (ann_out=True): x (B, in_feature) f32 -> pr (B, 4*n_out) f32.

    `tb` is the target batch tile (multiple of 128).  Default 8192 keeps
    per-step VMEM ~16 MB (safe for v7x's 64 MiB VMEM / 32 MiB scoped budget);
    on v5e/v6e (128 MiB VMEM) tb=16384 with a raised vmem limit gives a small
    additional win.
    """
    w1, b1, w2, b2, gamma, beta, w3, b3 = params
    del b2  # exactly cancelled by training-mode BatchNorm mean subtraction
    B, in_f = x.shape
    n_hidden = w1.shape[1]
    n_mid = w2.shape[1]
    n_final = w3.shape[1]

    TB = _pick_tile(B, tb)
    nt = -(-B // TB)
    b_pad = nt * TB
    n_chunks = TB // 128

    # Feature-major input: batch on lanes.  (The transpose+pad is one fused XLA
    # pass over x (~24 B/row); building (in, TB) tiles in-kernel from row-major
    # x would need a per-tile XLU transpose that costs far more.)
    x_t = jnp.pad(x.astype(jnp.float32).T, ((0, 0), (0, b_pad - B)))     # (in, b_pad)
    w1t = w1.T                                                           # (hid, in)
    b1t = b1.reshape(n_hidden, 1)
    w2t = w2.T                                                           # (mid, hid)
    w3t = w3.T                                                           # (out, mid)
    b3t = b3.reshape(n_final, 1)
    # Pivot c = pre-BN activation at x == 0 (b2 dropped); only used to
    # reconstruct the mean inside pass 2.
    c = (jnp.maximum(b1, 0.0) @ w2).reshape(n_mid, 1)

    def resident(shape):
        return pl.BlockSpec(shape, lambda i: (0, 0))

    vmem_limit = 32 * 1024 * 1024

    # ---- Pass 1: batch-tiled, lane-keeping accumulation of BN statistics ----
    h2_sum, h2_sq = pl.pallas_call(
        functools.partial(_stats_kernel, n_chunks=n_chunks),
        out_shape=(jax.ShapeDtypeStruct((n_mid, 128), jnp.float32),
                   jax.ShapeDtypeStruct((n_mid, 128), jnp.float32)),
        grid=(nt,),
        in_specs=[
            pl.BlockSpec((in_f, TB), lambda i: (0, i)),
            resident((n_hidden, in_f)),
            resident((n_hidden, 1)),
            resident((n_mid, n_hidden)),
        ],
        out_specs=(resident((n_mid, 128)), resident((n_mid, 128))),
        compiler_params=pltpu.CompilerParams(
            dimension_semantics=("arbitrary",),      # resident accumulators
            vmem_limit_bytes=vmem_limit),
        cost_estimate=pl.CostEstimate(
            flops=2 * b_pad * (in_f * n_hidden + n_hidden * n_mid),
            transcendentals=0,
            bytes_accessed=4 * (b_pad * in_f + 2 * n_mid * 128)),
    )(x_t, w1t, b1t, w2t)

    # ---- Pass 2: BN fold + output, stored batch-major via in-kernel transpose ----
    out = pl.pallas_call(
        functools.partial(_out_kernel, inv_b=1.0 / B),
        out_shape=jax.ShapeDtypeStruct((b_pad, n_final), jnp.float32),
        grid=(nt,),
        in_specs=[
            pl.BlockSpec((in_f, TB), lambda i: (0, i)),
            resident((n_hidden, in_f)),
            resident((n_hidden, 1)),
            resident((n_mid, n_hidden)),
            resident((n_mid, 128)),
            resident((n_mid, 128)),
            resident((n_mid, 1)),
            resident((n_mid, 1)),
            resident((n_mid, 1)),
            resident((n_final, n_mid)),
            resident((n_final, 1)),
        ],
        out_specs=pl.BlockSpec((TB, n_final), lambda i: (i, 0)),
        compiler_params=pltpu.CompilerParams(
            dimension_semantics=("parallel",),       # megacore sharding on v7x
            vmem_limit_bytes=vmem_limit),
        cost_estimate=pl.CostEstimate(
            flops=2 * b_pad * (in_f * n_hidden + n_hidden * n_mid + n_mid * n_final),
            transcendentals=n_mid,
            bytes_accessed=4 * b_pad * (in_f + n_final)),
    )(x_t, w1t, b1t, w2t, h2_sum, h2_sq, c,
      gamma.reshape(n_mid, 1), beta.reshape(n_mid, 1), w3t, b3t)

    return out if b_pad == B else out[:B]            # (B, 4*n_out), no transpose


def init_params(key, in_feature=3, n_out=10):
    n_hidden = 2 * in_feature + 1            # 7
    n_mid = n_hidden * 3 + 1                 # 22
    n_final = n_out * 4                      # 40
    ks = jax.random.split(key, 6)

    def linear(kw, kb, fan_in, fan_out):
        # PyTorch-style uniform(-1/sqrt(fan_in), 1/sqrt(fan_in)), stored as (in, out)
        bound = 1.0 / jnp.sqrt(jnp.float32(fan_in))
        w = jax.random.uniform(kw, (fan_in, fan_out), jnp.float32, -bound, bound)
        b = jax.random.uniform(kb, (1, fan_out), jnp.float32, -bound, bound)
        return w, b

    w1, b1 = linear(ks[0], ks[1], in_feature, n_hidden)
    w2, b2 = linear(ks[2], ks[3], n_hidden, n_mid)
    w3, b3 = linear(ks[4], ks[5], n_mid, n_final)
    gamma = jnp.ones((1, n_mid), jnp.float32)    # BatchNorm1d weight init = 1
    beta = jnp.zeros((1, n_mid), jnp.float32)    # BatchNorm1d bias init = 0
    return (w1, b1, w2, b2, gamma, beta, w3, b3)


def mmann_reference(x, params):
    w1, b1, w2, b2, gamma, beta, w3, b3 = params
    h1 = jnp.maximum(x @ w1 + b1, 0.0)
    h2 = h1 @ w2 + b2
    mean = jnp.mean(h2, axis=0, keepdims=True)
    var = jnp.mean((h2 - mean) ** 2, axis=0, keepdims=True)
    h2n = (h2 - mean) * jax.lax.rsqrt(var + BN_EPS) * gamma + beta
    return jnp.maximum(h2n, 0.0) @ w3 + b3


if __name__ == "__main__":
    key = jax.random.PRNGKey(0)
    kx, kp = jax.random.split(key)

    in_feature, n_out, batch = 3, 10, 300
    x = jax.random.normal(kx, (batch, in_feature), jnp.float32)
    params = init_params(kp, in_feature=in_feature, n_out=n_out)
    ref = mmann_reference(x, params)

    # Default tile: single ragged tile (TB=384), multi-chunk stats accumulation.
    pr = mmann_forward(x, params)
    jax.block_until_ready(pr)
    assert pr.shape == (batch, n_out * 4)
    err = float(jnp.max(jnp.abs(pr - ref)))
    assert err < 5e-3, f"max abs err {err} (default tb)"

    # Small tile: multi-tile grid + cross-tile BN statistic accumulation.
    pr2 = mmann_forward(x, params, tb=128)
    jax.block_until_ready(pr2)
    err2 = float(jnp.max(jnp.abs(pr2 - ref)))
    assert err2 < 5e-3, f"max abs err {err2} (tb=128)"

    print("KERNEL_OK")
</pallas_src>

<mosaic_0001>
module attributes {stable_mosaic.version = 11 : i64} {
  func.func @_stats_kernel(%arg0: i32, %arg1: memref<3x384xf32, #tpu.memory_space<vmem>>, %arg2: memref<7x3xf32, #tpu.memory_space<vmem>>, %arg3: memref<7x1xf32, #tpu.memory_space<vmem>>, %arg4: memref<22x7xf32, #tpu.memory_space<vmem>>, %arg5: memref<22x128xf32, #tpu.memory_space<vmem>>, %arg6: memref<22x128xf32, #tpu.memory_space<vmem>>) attributes {dimension_semantics = [#tpu.dimension_semantics<arbitrary>], iteration_bounds = array<i64: 1>, scalar_prefetch = 0 : i64, scratch_operands = 0 : i64, tpu.core_type = #tpu.core_type<tc>, window_params = [{transform_indices = @transform_0, window_bounds = array<i64: 3, 384>}, {pipeline_mode = #tpu.pipeline_mode<synchronous>, transform_indices = @transform_1, window_bounds = array<i64: 7, 3>}, {pipeline_mode = #tpu.pipeline_mode<synchronous>, transform_indices = @transform_2, window_bounds = array<i64: 7, 1>}, {pipeline_mode = #tpu.pipeline_mode<synchronous>, transform_indices = @transform_3, window_bounds = array<i64: 22, 7>}, {pipeline_mode = #tpu.pipeline_mode<synchronous>, transform_indices = @transform_4, window_bounds = array<i64: 22, 128>}, {pipeline_mode = #tpu.pipeline_mode<synchronous>, transform_indices = @transform_5, window_bounds = array<i64: 22, 128>}]} {
    %c0_i32 = arith.constant 0 : i32
    %0 = arith.cmpi eq, %arg0, %c0_i32 : i32
    %1 = arith.extui %0 : i1 to i32
    %c0_i32_0 = arith.constant 0 : i32
    %2 = arith.cmpi ne, %1, %c0_i32_0 : i32
    scf.if %2 {
      %cst_19 = arith.constant 0.000000e+00 : f32
      %33 = vector.broadcast %cst_19 : f32 to vector<22x128xf32>
      %c0_20 = arith.constant 0 : index
      %c0_21 = arith.constant 0 : index
      %34 = vector.load %arg5[%c0_20, %c0_21] : memref<22x128xf32, #tpu.memory_space<vmem>>, vector<22x128xf32>
      tpu.vector_store %arg5[%c0_20, %c0_21], %33 {strides = array<i32>} : memref<22x128xf32, #tpu.memory_space<vmem>>, vector<22x128xf32>,
      %cst_22 = arith.constant 0.000000e+00 : f32
      %35 = vector.broadcast %cst_22 : f32 to vector<22x128xf32>
      %c0_23 = arith.constant 0 : index
      %c0_24 = arith.constant 0 : index
      %36 = vector.load %arg6[%c0_23, %c0_24] : memref<22x128xf32, #tpu.memory_space<vmem>>, vector<22x128xf32>
      tpu.vector_store %arg6[%c0_23, %c0_24], %35 {strides = array<i32>} : memref<22x128xf32, #tpu.memory_space<vmem>>, vector<22x128xf32>,
    } else {
    }
    %c0 = arith.constant 0 : index
    %c0_1 = arith.constant 0 : index
    %3 = vector.load %arg1[%c0, %c0_1] : memref<3x384xf32, #tpu.memory_space<vmem>>, vector<3x384xf32>
    %c0_2 = arith.constant 0 : index
    %c0_3 = arith.constant 0 : index
    %4 = vector.load %arg3[%c0_2, %c0_3] : memref<7x1xf32, #tpu.memory_space<vmem>>, vector<7x1xf32>
    %c0_4 = arith.constant 0 : index
    %c0_5 = arith.constant 0 : index
    %5 = vector.load %arg2[%c0_4, %c0_5] : memref<7x3xf32, #tpu.memory_space<vmem>>, vector<7x3xf32>
    %cst = arith.constant dense<0.000000e+00> : vector<7x384xf32>
    %6 = tpu.matmul %5, %3, %cst {dimension_numbers = #tpu.dot_dimension_numbers<[1], [0], [0], [1], [0, 0, 1, 1], [], []>} : vector<7x3xf32>, vector<3x384xf32>, vector<7x384xf32> -> vector<7x384xf32>
    %7 = vector.broadcast %4 : vector<7x1xf32> to vector<7x384xf32>
    %8 = arith.addf %6, %7 : vector<7x384xf32>
    %cst_6 = arith.constant 0.000000e+00 : f32
    %9 = vector.broadcast %cst_6 : f32 to vector<7x384xf32>
    %10 = arith.maximumf %8, %9 : vector<7x384xf32>
    %cst_7 = arith.constant 0.000000e+00 : f32
    %11 = vector.broadcast %cst_7 : f32 to vector<7x1xf32>
    %12 = arith.maximumf %4, %11 : vector<7x1xf32>
    %13 = vector.broadcast %12 : vector<7x1xf32> to vector<7x384xf32>
    %14 = arith.subf %10, %13 : vector<7x384xf32>
    %c0_8 = arith.constant 0 : index
    %c0_9 = arith.constant 0 : index
    %15 = vector.load %arg4[%c0_8, %c0_9] : memref<22x7xf32, #tpu.memory_space<vmem>>, vector<22x7xf32>
    %cst_10 = arith.constant dense<0.000000e+00> : vector<22x384xf32>
    %16 = tpu.matmul %15, %14, %cst_10 {dimension_numbers = #tpu.dot_dimension_numbers<[1], [0], [0], [1], [0, 0, 1, 1], [], []>} : vector<22x7xf32>, vector<7x384xf32>, vector<22x384xf32> -> vector<22x384xf32>
    %17 = vector.extract_strided_slice %16 {offsets = [0, 0], sizes = [22, 128], strides = [1, 1]} : vector<22x384xf32> to vector<22x128xf32>
    %18 = arith.mulf %17, %17 : vector<22x128xf32>
    %19 = vector.extract_strided_slice %16 {offsets = [0, 128], sizes = [22, 128], strides = [1, 1]} : vector<22x384xf32> to vector<22x128xf32>
    %20 = arith.addf %17, %19 : vector<22x128xf32>
    %21 = arith.mulf %19, %19 : vector<22x128xf32>
    %22 = arith.addf %18, %21 : vector<22x128xf32>
    %23 = vector.extract_strided_slice %16 {offsets = [0, 256], sizes = [22, 128], strides = [1, 1]} : vector<22x384xf32> to vector<22x128xf32>
    %24 = arith.addf %20, %23 : vector<22x128xf32>
    %25 = arith.mulf %23, %23 : vector<22x128xf32>
    %26 = arith.addf %22, %25 : vector<22x128xf32>
    %c0_11 = arith.constant 0 : index
    %c0_12 = arith.constant 0 : index
    %27 = vector.load %arg5[%c0_11, %c0_12] : memref<22x128xf32, #tpu.memory_space<vmem>>, vector<22x128xf32>
    %28 = arith.addf %27, %24 : vector<22x128xf32>
    %c0_13 = arith.constant 0 : index
    %c0_14 = arith.constant 0 : index
    %29 = vector.load %arg5[%c0_13, %c0_14] : memref<22x128xf32, #tpu.memory_space<vmem>>, vector<22x128xf32>
    tpu.vector_store %arg5[%c0_13, %c0_14], %28 {strides = array<i32>} : memref<22x128xf32, #tpu.memory_space<vmem>>, vector<22x128xf32>,
    %c0_15 = arith.constant 0 : index
    %c0_16 = arith.constant 0 : index
    %30 = vector.load %arg6[%c0_15, %c0_16] : memref<22x128xf32, #tpu.memory_space<vmem>>, vector<22x128xf32>
    %31 = arith.addf %30, %26 : vector<22x128xf32>
    %c0_17 = arith.constant 0 : index
    %c0_18 = arith.constant 0 : index
    %32 = vector.load %arg6[%c0_17, %c0_18] : memref<22x128xf32, #tpu.memory_space<vmem>>, vector<22x128xf32>
    tpu.vector_store %arg6[%c0_17, %c0_18], %31 {strides = array<i32>} : memref<22x128xf32, #tpu.memory_space<vmem>>, vector<22x128xf32>,
    return
  }
  func.func @transform_0(%arg0: i32) -> (i32, i32) {
    %c0_i32 = arith.constant 0 : i32
    %c0_i32_0 = arith.constant 0 : i32
    return %c0_i32, %arg0 : i32, i32
  }
  func.func @transform_1(%arg0: i32) -> (i32, i32) {
    %c0_i32 = arith.constant 0 : i32
    %c0_i32_0 = arith.constant 0 : i32
    %c0_i32_1 = arith.constant 0 : i32
    return %c0_i32, %c0_i32_0 : i32, i32
  }
  func.func @transform_2(%arg0: i32) -> (i32, i32) {
    %c0_i32 = arith.constant 0 : i32
    %c0_i32_0 = arith.constant 0 : i32
    %c0_i32_1 = arith.constant 0 : i32
    return %c0_i32, %c0_i32_0 : i32, i32
  }
  func.func @transform_3(%arg0: i32) -> (i32, i32) {
    %c0_i32 = arith.constant 0 : i32
    %c0_i32_0 = arith.constant 0 : i32
    %c0_i32_1 = arith.constant 0 : i32
    return %c0_i32, %c0_i32_0 : i32, i32
  }
  func.func @transform_4(%arg0: i32) -> (i32, i32) {
    %c0_i32 = arith.constant 0 : i32
    %c0_i32_0 = arith.constant 0 : i32
    %c0_i32_1 = arith.constant 0 : i32
    return %c0_i32, %c0_i32_0 : i32, i32
  }
  func.func @transform_5(%arg0: i32) -> (i32, i32) {
    %c0_i32 = arith.constant 0 : i32
    %c0_i32_0 = arith.constant 0 : i32
    %c0_i32_1 = arith.constant 0 : i32
    return %c0_i32, %c0_i32_0 : i32, i32
  }
}

</mosaic_0001>

<llo_original>
// kernel: tpu_custom_call.1
$region0: #{tpu_custom_call.1}
  #allocation0 [shape = 'u32[]', space=smem, size = 0x4, offset = 0x4, fixed_abs, tag = 'smem constant byte address 0x4 - core index']
  #allocation1 [shape = 'u32[72,128]{1,0:T(1,128)}', space=vmem, size = 0x9000, scoped, tag = 'internal scratch']
  %s0 = inlined_call_operand.vmem [shape: f32[3,384], index: 0, kind: input, shape index: {}]
  %s1 = inlined_call_operand.vmem [shape: f32[7,3], index: 1, kind: input, shape index: {}]
  %s2 = inlined_call_operand.vmem [shape: f32[7,1], index: 2, kind: input, shape index: {}]
  %s3 = inlined_call_operand.vmem [shape: f32[22,7], index: 3, kind: input, shape index: {}]
  %s4 = inlined_call_operand.hbm [shape: f32[22,128], index: 4, kind: output, shape index: {0}]
  %s5 = inlined_call_operand.hbm [shape: f32[22,128], index: 5, kind: output, shape index: {1}]
  %6 = xla_tuple %s4, %s5
  %s7 = sld [smem:[#allocation0]]
  $region38: #{tpu_custom_call.1} parent=0
    _
  %s9 = ssub.s32 1, %s7
  %s10 = scalar_select 0, %s9, %s7
  $region1: #{tpu_custom_call.1} parent=0
    #allocation2 [shape = 'u8[12288]{0}', space=vmem, size = 0x3000, scoped, tag = 'output window, operand 0, single buffered']
    #allocation3 [shape = 's32[1]{0}', space=sflag, size = 0x4, scoped, tag = 'scoped memory for tpu_custom_call.1']
    #allocation4 [shape = 'u8[12288]{0}', space=vmem, size = 0x3000, scoped, tag = 'output window, operand 1, single buffered']
    #allocation5 [shape = 's32[1]{0}', space=sflag, size = 0x4, scoped, tag = 'scoped memory for tpu_custom_call.1']
    %11 = vsyncpa [#allocation3], 0
    %12 = vsyncpa [#allocation5], 0
    // Predicated region
    $region2: #{tpu_custom_call.1} parent=1 // pred_check
      _
    $region3: #{tpu_custom_call.1} parent=1 // pred_check_branch
      %14 = sbr.rel (0) target = $region5
    $region4: #{tpu_custom_call.1} parent=1 // pred_region
      _
    $region5: #{tpu_custom_call.1} parent=1 // pred_fallthru
      _
    // Predicated region
    $region6: #{tpu_custom_call.1} parent=1 // pred_check
      _
    $region7: #{tpu_custom_call.1} parent=1 // pred_check_branch
      %16 = sbr.rel (0) target = $region9
    $region8: #{tpu_custom_call.1} parent=1 // pred_region
      _
    $region9: #{tpu_custom_call.1} parent=1 // pred_fallthru
      _
    // Predicated region
    $region10: #{tpu_custom_call.1} parent=1 // pred_check
      _
    $region11: #{tpu_custom_call.1} parent=1 // pred_check_branch
      %18 = sbr.rel (0) target = $region13
    $region12: #{tpu_custom_call.1} parent=1 // pred_region
      _
    $region13: #{tpu_custom_call.1} parent=1 // pred_fallthru
      _
    // Predicated region
    $region14: #{tpu_custom_call.1} parent=1 // pred_check
      _
    $region15: #{tpu_custom_call.1} parent=1 // pred_check_branch
      %20 = sbr.rel (0) target = $region17
    $region16: #{tpu_custom_call.1} parent=1 // pred_region
      _
    $region17: #{tpu_custom_call.1} parent=1 // pred_fallthru
      _
    %p21 = scmp.eq.s32.totalorder 0, 0
    // Predicated region
    $region18: #{tpu_custom_call.1} parent=1 // pred_check
      %p22 = pneg %p21
    $region19: #{tpu_custom_call.1} parent=1 // pred_check_branch
      %24 = sbr.rel (%p22) target = $region21
    $region20: #{tpu_custom_call.1} parent=1 // pred_region
      %25 = vst [vmem:[#allocation2] sm:$0xff] 0.0
      %26 = vst [vmem:[#allocation2 + $0x8] sm:$0xff] 0.0
      %27 = vst [vmem:[#allocation2 + $0x10] sm:$0x3f] 0.0
      %28 = vst [vmem:[#allocation4] sm:$0xff] 0.0
      %29 = vst [vmem:[#allocation4 + $0x8] sm:$0xff] 0.0
      %30 = vst [vmem:[#allocation4 + $0x10] sm:$0x3f] 0.0
    $region21: #{tpu_custom_call.1} parent=1 // pred_fallthru
      _
    %v31 = vld [vmem:[%s0] sm:$0x77]
    %v32 = vld [vmem:[%s0 + $0x8] sm:$0x7]
    %v33 = vld [vmem:[%s2] sm:$0x7f]
    %v34 = vld [vmem:[%s1] sm:$0x7f]
    %36 = vset.pattern.permute.xlu0 0
    %37 = vperm.xlu0 %36, %v33
    %v38 = vpop.permute.xlu0 %37
    %42 = vst [vmem:[#allocation1] ss:$2 sm:$0xff] %v31
    %s43 = scalar_lea.vmem [#allocation1], 16
    %44 = vst [vmem:[%s43] ss:$2 sm:$0xff] %v32
    %v45 = vld.sshfl [vmem:[#allocation1] sm:$0xff pattern:$0x75316420]
    %v46 = vld.sshfl [vmem:[#allocation1 + $0x8] sm:$0xff pattern:$0x75316420]
    %v47 = vld.sshfl [vmem:[#allocation1 + $0x10] sm:$0xff pattern:$0x75316420]
    %vm48 = vcmask 23552
    %v50 = vsel %vm48, %v34, 0
    %vm52 = vcmask 1042432
    %v53 = vsel %vm52, %v45, 0
    %v55 = vsel %vm52, %v46, 0
    %v57 = vsel %vm52, %v47, 0
    %59 = vmatpush.msra.mxu0 0.0
    %60 = vmatpush.msra.mxu0 0.0
    %61 = vmatpush.msra.mxu0 0.0
    %62 = vmatpush.msra.mxu0 0.0
    %63 = vmatpush.msra.mxu0 0.0
    %64 = vmatpush.msra.mxu0 0.0
    %65 = vmatpush.msra.mxu0 0.0
    %66 = vmatpush.msra.mxu0 0.0
    %67 = vmatpush.msra.mxu0 0.0
    %68 = vmatpush.msra.mxu0 0.0
    %69 = vmatpush.msra.mxu0 0.0
    %70 = vmatpush.msra.mxu0 0.0
    %71 = vmatpush.msra.mxu0 0.0
    %72 = vmatpush.msra.mxu0 0.0
    %73 = vmatpush.msra.mxu0 0.0
    %74 = vmatpush.msra.mxu0 %v53
    %75 = vmatmul.f32.gmra.mxu0 %v50
    %v76 = vpop.f32.mrf.mxu0
    %v77 = vadd.f32 %v38, %v76
    %78 = vdwg.mxu0
    %79 = vmatpush.msra.mxu0 0.0
    %80 = vmatpush.msra.mxu0 0.0
    %81 = vmatpush.msra.mxu0 0.0
    %82 = vmatpush.msra.mxu0 0.0
    %83 = vmatpush.msra.mxu0 0.0
    %84 = vmatpush.msra.mxu0 0.0
    %85 = vmatpush.msra.mxu0 0.0
    %86 = vmatpush.msra.mxu0 0.0
    %87 = vmatpush.msra.mxu0 0.0
    %88 = vmatpush.msra.mxu0 0.0
    %89 = vmatpush.msra.mxu0 0.0
    %90 = vmatpush.msra.mxu0 0.0
    %91 = vmatpush.msra.mxu0 0.0
    %92 = vmatpush.msra.mxu0 0.0
    %93 = vmatpush.msra.mxu0 0.0
    %94 = vmatpush.msra.mxu0 %v55
    %95 = vmatmul.f32.gmra.mxu0 %v50
    %v96 = vpop.f32.mrf.mxu0
    %v97 = vadd.f32 %v38, %v96
    %98 = vdwg.mxu0
    %99 = vmatpush.msra.mxu0 0.0
    %100 = vmatpush.msra.mxu0 0.0
    %101 = vmatpush.msra.mxu0 0.0
    %102 = vmatpush.msra.mxu0 0.0
    %103 = vmatpush.msra.mxu0 0.0
    %104 = vmatpush.msra.mxu0 0.0
    %105 = vmatpush.msra.mxu0 0.0
    %106 = vmatpush.msra.mxu0 0.0
    %107 = vmatpush.msra.mxu0 0.0
    %108 = vmatpush.msra.mxu0 0.0
    %109 = vmatpush.msra.mxu0 0.0
    %110 = vmatpush.msra.mxu0 0.0
    %111 = vmatpush.msra.mxu0 0.0
    %112 = vmatpush.msra.mxu0 0.0
    %113 = vmatpush.msra.mxu0 0.0
    %114 = vmatpush.msra.mxu0 %v57
    %115 = vmatmul.f32.gmra.mxu0 %v50
    %v116 = vpop.f32.mrf.mxu0
    %v117 = vadd.f32 %v38, %v116
    %118 = vdwg.mxu0
    %v119 = vmax.f32 %v77, 0.0
    %v120 = vmax.f32 %v97, 0.0
    %v121 = vmax.f32 %v117, 0.0
    %v122 = vmax.f32 %v33, 0.0
    %124 = vset.pattern.permute.xlu0 0
    %125 = vperm.xlu0 %124, %v122
    %v126 = vpop.permute.xlu0 %125
    %v128 = vsub.f32 %v119, %v126
    %v129 = vsub.f32 %v120, %v126
    %v130 = vsub.f32 %v121, %v126
    %v131 = vld [vmem:[%s3] sm:$0xff]
    %v132 = vld [vmem:[%s3 + $0x8] sm:$0xff]
    %v133 = vld [vmem:[%s3 + $0x10] sm:$0x3f]
    %vm134 = vcmask 56320
    %v136 = vsel %vm134, %v131, 0
    %v139 = vsel %vm134, %v132, 0
    %v142 = vsel %vm134, %v133, 0
    %vm144 = vcmask 1046528
    %v146 = vsel %vm144, %v128, 0
    %v149 = vsel %vm144, %v129, 0
    %v152 = vsel %vm144, %v130, 0
    %154 = vmatpush.msra.mxu0 0.0
    %155 = vmatpush.msra.mxu0 0.0
    %156 = vmatpush.msra.mxu0 0.0
    %157 = vmatpush.msra.mxu0 0.0
    %158 = vmatpush.msra.mxu0 0.0
    %159 = vmatpush.msra.mxu0 0.0
    %160 = vmatpush.msra.mxu0 0.0
    %161 = vmatpush.msra.mxu0 0.0
    %162 = vmatpush.msra.mxu0 0.0
    %163 = vmatpush.msra.mxu0 0.0
    %164 = vmatpush.msra.mxu0 0.0
    %165 = vmatpush.msra.mxu0 0.0
    %166 = vmatpush.msra.mxu0 0.0
    %167 = vmatpush.msra.mxu0 0.0
    %168 = vmatpush.msra.mxu0 0.0
    %169 = vmatpush.msra.mxu0 %v146
    %170 = vmatmul.f32.gmra.mxu0 %v136
    %v171 = vpop.f32.mrf.mxu0
    %v172 = vadd.f32 0.0, %v171
    %173 = vmatmul.f32.gmra.mxu0 %v139
    %v174 = vpop.f32.mrf.mxu0
    %v175 = vadd.f32 0.0, %v174
    %176 = vmatmul.f32.gmra.mxu0 %v142
    %v177 = vpop.f32.mrf.mxu0
    %v178 = vadd.f32 0.0, %v177
    %179 = vdwg.mxu0
    %180 = vmatpush.msra.mxu0 0.0
    %181 = vmatpush.msra.mxu0 0.0
    %182 = vmatpush.msra.mxu0 0.0
    %183 = vmatpush.msra.mxu0 0.0
    %184 = vmatpush.msra.mxu0 0.0
    %185 = vmatpush.msra.mxu0 0.0
    %186 = vmatpush.msra.mxu0 0.0
    %187 = vmatpush.msra.mxu0 0.0
    %188 = vmatpush.msra.mxu0 0.0
    %189 = vmatpush.msra.mxu0 0.0
    %190 = vmatpush.msra.mxu0 0.0
    %191 = vmatpush.msra.mxu0 0.0
    %192 = vmatpush.msra.mxu0 0.0
    %193 = vmatpush.msra.mxu0 0.0
    %194 = vmatpush.msra.mxu0 0.0
    %195 = vmatpush.msra.mxu0 %v149
    %196 = vmatmul.f32.gmra.mxu0 %v136
    %v197 = vpop.f32.mrf.mxu0
    %v198 = vadd.f32 0.0, %v197
    %199 = vmatmul.f32.gmra.mxu0 %v139
    %v200 = vpop.f32.mrf.mxu0
    %v201 = vadd.f32 0.0, %v200
    %202 = vmatmul.f32.gmra.mxu0 %v142
    %v203 = vpop.f32.mrf.mxu0
    %v204 = vadd.f32 0.0, %v203
    %205 = vdwg.mxu0
    %206 = vmatpush.msra.mxu0 0.0
    %207 = vmatpush.msra.mxu0 0.0
    %208 = vmatpush.msra.mxu0 0.0
    %209 = vmatpush.msra.mxu0 0.0
    %210 = vmatpush.msra.mxu0 0.0
    %211 = vmatpush.msra.mxu0 0.0
    %212 = vmatpush.msra.mxu0 0.0
    %213 = vmatpush.msra.mxu0 0.0
    %214 = vmatpush.msra.mxu0 0.0
    %215 = vmatpush.msra.mxu0 0.0
    %216 = vmatpush.msra.mxu0 0.0
    %217 = vmatpush.msra.mxu0 0.0
    %218 = vmatpush.msra.mxu0 0.0
    %219 = vmatpush.msra.mxu0 0.0
    %220 = vmatpush.msra.mxu0 0.0
    %221 = vmatpush.msra.mxu0 %v152
    %222 = vmatmul.f32.gmra.mxu0 %v136
    %v223 = vpop.f32.mrf.mxu0
    %v224 = vadd.f32 0.0, %v223
    %225 = vmatmul.f32.gmra.mxu0 %v139
    %v226 = vpop.f32.mrf.mxu0
    %v227 = vadd.f32 0.0, %v226
    %228 = vmatmul.f32.gmra.mxu0 %v142
    %v229 = vpop.f32.mrf.mxu0
    %v230 = vadd.f32 0.0, %v229
    %231 = vdwg.mxu0
    %v232 = vmul.f32 %v172, %v172
    %v233 = vmul.f32 %v175, %v175
    %v234 = vmul.f32 %v178, %v178
    %v235 = vadd.f32 %v172, %v198
    %v236 = vadd.f32 %v175, %v201
    %v237 = vadd.f32 %v178, %v204
    %v238 = vmul.f32 %v198, %v198
    %v239 = vmul.f32 %v201, %v201
    %v240 = vmul.f32 %v204, %v204
    %v241 = vadd.f32 %v232, %v238
    %v242 = vadd.f32 %v233, %v239
    %v243 = vadd.f32 %v234, %v240
    %v244 = vadd.f32 %v235, %v224
    %v245 = vadd.f32 %v236, %v227
    %v246 = vadd.f32 %v237, %v230
    %v247 = vmul.f32 %v224, %v224
    %v248 = vmul.f32 %v227, %v227
    %v249 = vmul.f32 %v230, %v230
    %v250 = vadd.f32 %v241, %v247
    %v251 = vadd.f32 %v242, %v248
    %v252 = vadd.f32 %v243, %v249
    %v253 = vld [vmem:[#allocation2] sm:$0xff]
    %v254 = vld [vmem:[#allocation2 + $0x8] sm:$0xff]
    %v255 = vld [vmem:[#allocation2 + $0x10] sm:$0x3f]
    %v256 = vadd.f32 %v253, %v244
    %v257 = vadd.f32 %v254, %v245
    %v258 = vadd.f32 %v255, %v246
    %259 = vst [vmem:[#allocation2] sm:$0xff] %v256
    %260 = vst [vmem:[#allocation2 + $0x8] sm:$0xff] %v257
    %261 = vst [vmem:[#allocation2 + $0x10] sm:$0x3f] %v258
    %v262 = vld [vmem:[#allocation4] sm:$0xff]
    %v263 = vld [vmem:[#allocation4 + $0x8] sm:$0xff]
    %v264 = vld [vmem:[#allocation4 + $0x10] sm:$0x3f]
    %v265 = vadd.f32 %v262, %v250
    %v266 = vadd.f32 %v263, %v251
    %v267 = vadd.f32 %v264, %v252
    %268 = vst [vmem:[#allocation4] sm:$0xff] %v265
    %269 = vst [vmem:[#allocation4 + $0x8] sm:$0xff] %v266
    %270 = vst [vmem:[#allocation4 + $0x10] sm:$0x3f] %v267
    // Predicated region
    $region22: #{tpu_custom_call.1} parent=1 // pred_check
      _
    $region23: #{tpu_custom_call.1} parent=1 // pred_check_branch
      %272 = sbr.rel (0) target = $region25
    $region24: #{tpu_custom_call.1} parent=1 // pred_region
      %274 = vsyncadd [#allocation3], 0
      %s275 = sshll.u32 [#allocation2], 4
      %s276 = int_to_ptr.vmem [resolvable:$true] %s275
      %s277 = sshll.u32 %s4, 4
      %s278 = int_to_ptr.hbm [resolvable:$true] %s277
      %283 = dma.vmem_to_hbm [thread:$0]  %s276, 384, %s278, [#allocation3], 128, 128, 8
    $region25: #{tpu_custom_call.1} parent=1 // pred_fallthru
      _
    // Predicated region
    $region26: #{tpu_custom_call.1} parent=1 // pred_check
      _
    $region27: #{tpu_custom_call.1} parent=1 // pred_check_branch
      %285 = sbr.rel (0) target = $region29
    $region28: #{tpu_custom_call.1} parent=1 // pred_region
      %287 = vsyncadd [#allocation5], 0
      %s288 = sshll.u32 [#allocation4], 4
      %s289 = int_to_ptr.vmem [resolvable:$true] %s288
      %s290 = sshll.u32 %s5, 4
      %s291 = int_to_ptr.hbm [resolvable:$true] %s290
      %296 = dma.vmem_to_hbm [thread:$0]  %s289, 384, %s291, [#allocation5], 128, 128, 8
    $region29: #{tpu_custom_call.1} parent=1 // pred_fallthru
      _
    // Predicated region
    $region30: #{tpu_custom_call.1} parent=1 // pred_check
      _
    $region31: #{tpu_custom_call.1} parent=1 // pred_check_branch
      %298 = sbr.rel (0) target = $region33
    $region32: #{tpu_custom_call.1} parent=1 // pred_region
      %300 = dma.done [#allocation3], 384
    $region33: #{tpu_custom_call.1} parent=1 // pred_fallthru
      _
    // Predicated region
    $region34: #{tpu_custom_call.1} parent=1 // pred_check
      _
    $region35: #{tpu_custom_call.1} parent=1 // pred_check_branch
      %302 = sbr.rel (0) target = $region37
    $region36: #{tpu_custom_call.1} parent=1 // pred_region
      %304 = dma.done [#allocation5], 384
    $region37: #{tpu_custom_call.1} parent=1 // pred_fallthru
      _
    %305 = vsyncpa [#allocation3], 1
    %306 = vsyncpa [#allocation5], 1

</llo_original>
